<compile_context>
chip_gen: v7x
topology: tpu7x:2x2x1
jax: 0.10.0
libtpu: 0.0.40
codegen_flags: <defaults>
</compile_context>

<pallas_src>
import jax
import jax.numpy as jnp
from jax import lax
from jax.experimental import pallas as pl
from jax.experimental.pallas import tpu as pltpu


def _make_encoder_kernel(H, W, Cin, Cout):
    HW = H * W
    # Flat staging buffer layout: [ unread | zero halo (W+1) | image (HW) | zero halo (W+1) ]
    # The image starts at a 128-aligned lane offset so the interior store is
    # an unmasked, aligned store; taps only ever read W+1 lanes on each side.
    OFF = max(128, -(-(W + 1) // 128) * 128)
    BUF = OFF + HW + W + 1
    HEAD = OFF - (W + 1)

    def kernel(x_ref, w1_ref, b1_ref, w2_ref, b2_ref, o_ref, xbuf, ybuf):
        f32 = jnp.float32

        # Horizontal-boundary lane masks (depend only on W; shared by both convs).
        col = lax.broadcasted_iota(jnp.int32, (1, HW), 1) % W
        not_first_col = col != 0          # tap samples w-1 -> invalid at w == 0
        not_last_col = col != (W - 1)     # tap samples w+1 -> invalid at w == W-1

        def conv3x3_relu(buf_ref, wt, bias):
            # buf_ref: (cin, BUF) zero-haloed flat image; wt: (Cout, 9*cin);
            # bias: (Cout, 1).  Returns (Cout, HW) in f32.
            taps = []
            for oh in (-1, 0, 1):
                for ow in (-1, 0, 1):
                    s = OFF + oh * W + ow
                    t = buf_ref[:, s:s + HW]          # (cin, HW) lane slice
                    if ow == -1:
                        t = jnp.where(not_first_col, t, 0.0)
                    elif ow == 1:
                        t = jnp.where(not_last_col, t, 0.0)
                    taps.append(t)
            pt = jnp.concatenate(taps, axis=0)        # (9*cin, HW) im2col^T
            acc = jnp.dot(wt, pt, preferred_element_type=f32)   # (Cout, HW)
            return jnp.maximum(acc + bias, 0.0)

        def stage(buf_ref, img, c):
            # Zero only the halo lanes the taps actually read, every step.
            buf_ref[:, HEAD:OFF] = jnp.zeros((c, W + 1), f32)
            buf_ref[:, OFF + HW:BUF] = jnp.zeros((c, W + 1), f32)
            buf_ref[:, OFF:OFF + HW] = img

        # ---- conv1 + ReLU ----
        stage(xbuf, x_ref[0].astype(f32), Cin)
        y1 = conv3x3_relu(xbuf, w1_ref[...], b1_ref[...])        # (Cout, HW)

        # ---- conv2 + ReLU ----
        stage(ybuf, y1, Cout)
        y2 = conv3x3_relu(ybuf, w2_ref[...], b2_ref[...])        # (Cout, HW)

        o_ref[0, :, :] = y2.astype(o_ref.dtype)

    return kernel, BUF


def encoder_block(x_nchw, w1, b1, w2, b2):
    """x_nchw: (N, Cin, H, W). Weights in HWIO: w1 (3,3,Cin,Cout), w2 (3,3,Cout,Cout)."""
    N, Cin, H, W = x_nchw.shape
    Cout = w1.shape[-1]
    HW = H * W

    # Free (metadata-only) reshapes / tiny param reshapes -- no HBM passes.
    x_flat = x_nchw.reshape(N, Cin, HW)               # NCHW order preserved
    w1t = w1.reshape(9 * Cin, Cout).T                 # (Cout, 9*Cin)
    w2t = w2.reshape(9 * Cout, Cout).T                # (Cout, 9*Cout)
    b1c = b1.reshape(Cout, 1)
    b2c = b2.reshape(Cout, 1)

    kernel, BUF = _make_encoder_kernel(H, W, Cin, Cout)

    out_flat = pl.pallas_call(
        kernel,
        out_shape=jax.ShapeDtypeStruct((N, Cout, HW), x_nchw.dtype),
        grid_spec=pltpu.PrefetchScalarGridSpec(
            num_scalar_prefetch=0,
            grid=(N,),
            in_specs=[
                pl.BlockSpec((1, Cin, HW), lambda n: (n, 0, 0)),
                pl.BlockSpec((Cout, 9 * Cin), lambda n: (0, 0)),
                pl.BlockSpec((Cout, 1), lambda n: (0, 0)),
                pl.BlockSpec((Cout, 9 * Cout), lambda n: (0, 0)),
                pl.BlockSpec((Cout, 1), lambda n: (0, 0)),
            ],
            out_specs=pl.BlockSpec((1, Cout, HW), lambda n: (n, 0, 0)),
            scratch_shapes=[
                pltpu.VMEM((Cin, BUF), jnp.float32),
                pltpu.VMEM((Cout, BUF), jnp.float32),
            ],
        ),
        compiler_params=pltpu.CompilerParams(
            dimension_semantics=("parallel",)),
    )(x_flat, w1t, b1c, w2t, b2c)

    return out_flat.reshape(N, Cout, H, W)            # free reshape back to NCHW


def _reference(x_nchw, w1, b1, w2, b2):
    """Pure-JAX reference (NCHW, HWIO weights) for validation."""
    dn = lax.conv_dimension_numbers(x_nchw.shape, w1.shape, ("NCHW", "HWIO", "NCHW"))
    y = lax.conv_general_dilated(x_nchw, w1, (1, 1), ((1, 1), (1, 1)),
                                 dimension_numbers=dn)
    y = jnp.maximum(y + b1.reshape(1, -1, 1, 1), 0.0)
    dn2 = lax.conv_dimension_numbers(y.shape, w2.shape, ("NCHW", "HWIO", "NCHW"))
    z = lax.conv_general_dilated(y, w2, (1, 1), ((1, 1), (1, 1)),
                                 dimension_numbers=dn2)
    return jnp.maximum(z + b2.reshape(1, -1, 1, 1), 0.0)


if __name__ == "__main__":
    N, Cin, Cout, H, W = 2, 4, 8, 16, 16

    key = jax.random.PRNGKey(0)
    kx, k1, kb1, k2, kb2 = jax.random.split(key, 5)

    x = jax.random.normal(kx, (N, Cin, H, W), dtype=jnp.float32)
    # Deterministic synthetic parameters (HWIO layout), scaled ~ kaiming-ish.
    w1 = jax.random.normal(k1, (3, 3, Cin, Cout), dtype=jnp.float32) * (1.0 / (3 * 3 * Cin)) ** 0.5
    b1 = jax.random.normal(kb1, (Cout,), dtype=jnp.float32) * 0.1
    w2 = jax.random.normal(k2, (3, 3, Cout, Cout), dtype=jnp.float32) * (1.0 / (3 * 3 * Cout)) ** 0.5
    b2 = jax.random.normal(kb2, (Cout,), dtype=jnp.float32) * 0.1

    out = encoder_block(x, w1, b1, w2, b2)
    out = jax.block_until_ready(out)

    ref = jax.block_until_ready(_reference(x, w1, b1, w2, b2))
    assert out.shape == (N, Cout, H, W)
    assert jnp.allclose(out, ref, rtol=1e-4, atol=1e-4), "mismatch vs reference conv"

    print("KERNEL_OK")
</pallas_src>

<mosaic_0001>
module attributes {stable_mosaic.version = 11 : i64} {
  func.func @kernel(%arg0: i32, %arg1: memref<1x4x256xf32, #tpu.memory_space<vmem>>, %arg2: memref<8x36xf32, #tpu.memory_space<vmem>>, %arg3: memref<8x1xf32, #tpu.memory_space<vmem>>, %arg4: memref<8x72xf32, #tpu.memory_space<vmem>>, %arg5: memref<8x1xf32, #tpu.memory_space<vmem>>, %arg6: memref<1x8x256xf32, #tpu.memory_space<vmem>>, %arg7: memref<4x401xf32, #tpu.memory_space<vmem>>, %arg8: memref<8x401xf32, #tpu.memory_space<vmem>>) attributes {dimension_semantics = [#tpu.dimension_semantics<parallel>], iteration_bounds = array<i64: 2>, scalar_prefetch = 0 : i64, scratch_operands = 2 : i64, tpu.core_type = #tpu.core_type<tc>, window_params = [{transform_indices = @transform_0, window_bounds = array<i64: 1, 4, 256>}, {pipeline_mode = #tpu.pipeline_mode<synchronous>, transform_indices = @transform_1, window_bounds = array<i64: 8, 36>}, {pipeline_mode = #tpu.pipeline_mode<synchronous>, transform_indices = @transform_2, window_bounds = array<i64: 8, 1>}, {pipeline_mode = #tpu.pipeline_mode<synchronous>, transform_indices = @transform_3, window_bounds = array<i64: 8, 72>}, {pipeline_mode = #tpu.pipeline_mode<synchronous>, transform_indices = @transform_4, window_bounds = array<i64: 8, 1>}, {transform_indices = @transform_5, window_bounds = array<i64: 1, 8, 256>}]} {
    %0 = tpu.iota {dimensions = array<i32: 1>} : vector<1x256xi32>
    %c16_i32 = arith.constant 16 : i32
    %c0_i32 = arith.constant 0 : i32
    %1 = arith.cmpi eq, %c16_i32, %c0_i32 : i32
    %c1_i32 = arith.constant 1 : i32
    %2 = arith.select %1, %c1_i32, %c16_i32 : i32
    %3 = vector.broadcast %2 : i32 to vector<1x256xi32>
    %4 = arith.remsi %0, %3 : vector<1x256xi32>
    %c0_i32_0 = arith.constant 0 : i32
    %5 = vector.broadcast %c0_i32_0 : i32 to vector<1x256xi32>
    %6 = arith.cmpi ne, %4, %5 : vector<1x256xi32>
    %c0_i32_1 = arith.constant 0 : i32
    %7 = vector.broadcast %c0_i32_1 : i32 to vector<1x256xi32>
    %8 = arith.cmpi slt, %4, %7 : vector<1x256xi32>
    %c0_i32_2 = arith.constant 0 : i32
    %9 = arith.cmpi slt, %2, %c0_i32_2 : i32
    %10 = vector.broadcast %9 : i1 to vector<1x256xi1>
    %11 = vector.broadcast %10 : vector<1x256xi1> to vector<1x256xi1>
    %12 = arith.xori %8, %11 : vector<1x256xi1>
    %13 = arith.andi %12, %6 : vector<1x256xi1>
    %14 = vector.broadcast %2 : i32 to vector<1x256xi32>
    %15 = arith.addi %4, %14 : vector<1x256xi32>
    %16 = arith.select %13, %15, %4 : vector<1x256xi1>, vector<1x256xi32>
    %c0_i32_3 = arith.constant 0 : i32
    %17 = vector.broadcast %c0_i32_3 : i32 to vector<1x256xi32>
    %18 = arith.cmpi ne, %16, %17 : vector<1x256xi32>
    %c15_i32 = arith.constant 15 : i32
    %19 = vector.broadcast %c15_i32 : i32 to vector<1x256xi32>
    %20 = arith.cmpi ne, %16, %19 : vector<1x256xi32>
    %c0 = arith.constant 0 : index
    %c0_4 = arith.constant 0 : index
    %c0_5 = arith.constant 0 : index
    %21 = vector.load %arg1[%c0, %c0_4, %c0_5] : memref<1x4x256xf32, #tpu.memory_space<vmem>>, vector<1x4x256xf32>
    %22 = vector.shape_cast %21 : vector<1x4x256xf32> to vector<4x256xf32>
    %cst = arith.constant 0.000000e+00 : f32
    %23 = vector.broadcast %cst : f32 to vector<4x17xf32>
    %c0_6 = arith.constant 0 : index
    %c111 = arith.constant 111 : index
    %24 = vector.load %arg7[%c0_6, %c111] : memref<4x401xf32, #tpu.memory_space<vmem>>, vector<4x17xf32>
    tpu.vector_store %arg7[%c0_6, %c111], %23 {strides = array<i32>} : memref<4x401xf32, #tpu.memory_space<vmem>>, vector<4x17xf32>,
    %cst_7 = arith.constant 0.000000e+00 : f32
    %25 = vector.broadcast %cst_7 : f32 to vector<4x17xf32>
    %c0_8 = arith.constant 0 : index
    %c384 = arith.constant 384 : index
    %26 = vector.load %arg7[%c0_8, %c384] : memref<4x401xf32, #tpu.memory_space<vmem>>, vector<4x17xf32>
    tpu.vector_store %arg7[%c0_8, %c384], %25 {strides = array<i32>} : memref<4x401xf32, #tpu.memory_space<vmem>>, vector<4x17xf32>,
    %c0_9 = arith.constant 0 : index
    %c128 = arith.constant 128 : index
    %27 = vector.load %arg7[%c0_9, %c128] : memref<4x401xf32, #tpu.memory_space<vmem>>, vector<4x256xf32>
    tpu.vector_store %arg7[%c0_9, %c128], %22 {strides = array<i32>} : memref<4x401xf32, #tpu.memory_space<vmem>>, vector<4x256xf32>,
    %c0_10 = arith.constant 0 : index
    %c0_11 = arith.constant 0 : index
    %28 = vector.load %arg2[%c0_10, %c0_11] : memref<8x36xf32, #tpu.memory_space<vmem>>, vector<8x36xf32>
    %c0_12 = arith.constant 0 : index
    %c0_13 = arith.constant 0 : index
    %29 = vector.load %arg3[%c0_12, %c0_13] : memref<8x1xf32, #tpu.memory_space<vmem>>, vector<8x1xf32>
    %c0_14 = arith.constant 0 : index
    %c111_15 = arith.constant 111 : index
    %30 = vector.load %arg7[%c0_14, %c111_15] : memref<4x401xf32, #tpu.memory_space<vmem>>, vector<4x256xf32>
    %cst_16 = arith.constant 0.000000e+00 : f32
    %31 = vector.shape_cast %18 : vector<1x256xi1> to vector<1x256xi1>
    %32 = vector.broadcast %31 : vector<1x256xi1> to vector<4x256xi1>
    %33 = vector.broadcast %cst_16 : f32 to vector<4x256xf32>
    %34 = arith.select %32, %30, %33 : vector<4x256xi1>, vector<4x256xf32>
    %c0_17 = arith.constant 0 : index
    %c112 = arith.constant 112 : index
    %35 = vector.load %arg7[%c0_17, %c112] : memref<4x401xf32, #tpu.memory_space<vmem>>, vector<4x256xf32>
    %c0_18 = arith.constant 0 : index
    %c113 = arith.constant 113 : index
    %36 = vector.load %arg7[%c0_18, %c113] : memref<4x401xf32, #tpu.memory_space<vmem>>, vector<4x256xf32>
    %cst_19 = arith.constant 0.000000e+00 : f32
    %37 = vector.shape_cast %20 : vector<1x256xi1> to vector<1x256xi1>
    %38 = vector.broadcast %37 : vector<1x256xi1> to vector<4x256xi1>
    %39 = vector.broadcast %cst_19 : f32 to vector<4x256xf32>
    %40 = arith.select %38, %36, %39 : vector<4x256xi1>, vector<4x256xf32>
    %c0_20 = arith.constant 0 : index
    %c127 = arith.constant 127 : index
    %41 = vector.load %arg7[%c0_20, %c127] : memref<4x401xf32, #tpu.memory_space<vmem>>, vector<4x256xf32>
    %cst_21 = arith.constant 0.000000e+00 : f32
    %42 = vector.shape_cast %18 : vector<1x256xi1> to vector<1x256xi1>
    %43 = vector.broadcast %42 : vector<1x256xi1> to vector<4x256xi1>
    %44 = vector.broadcast %cst_21 : f32 to vector<4x256xf32>
    %45 = arith.select %43, %41, %44 : vector<4x256xi1>, vector<4x256xf32>
    %c0_22 = arith.constant 0 : index
    %c128_23 = arith.constant 128 : index
    %46 = vector.load %arg7[%c0_22, %c128_23] : memref<4x401xf32, #tpu.memory_space<vmem>>, vector<4x256xf32>
    %c0_24 = arith.constant 0 : index
    %c129 = arith.constant 129 : index
    %47 = vector.load %arg7[%c0_24, %c129] : memref<4x401xf32, #tpu.memory_space<vmem>>, vector<4x256xf32>
    %cst_25 = arith.constant 0.000000e+00 : f32
    %48 = vector.shape_cast %20 : vector<1x256xi1> to vector<1x256xi1>
    %49 = vector.broadcast %48 : vector<1x256xi1> to vector<4x256xi1>
    %50 = vector.broadcast %cst_25 : f32 to vector<4x256xf32>
    %51 = arith.select %49, %47, %50 : vector<4x256xi1>, vector<4x256xf32>
    %c0_26 = arith.constant 0 : index
    %c143 = arith.constant 143 : index
    %52 = vector.load %arg7[%c0_26, %c143] : memref<4x401xf32, #tpu.memory_space<vmem>>, vector<4x256xf32>
    %cst_27 = arith.constant 0.000000e+00 : f32
    %53 = vector.shape_cast %18 : vector<1x256xi1> to vector<1x256xi1>
    %54 = vector.broadcast %53 : vector<1x256xi1> to vector<4x256xi1>
    %55 = vector.broadcast %cst_27 : f32 to vector<4x256xf32>
    %56 = arith.select %54, %52, %55 : vector<4x256xi1>, vector<4x256xf32>
    %c0_28 = arith.constant 0 : index
    %c144 = arith.constant 144 : index
    %57 = vector.load %arg7[%c0_28, %c144] : memref<4x401xf32, #tpu.memory_space<vmem>>, vector<4x256xf32>
    %c0_29 = arith.constant 0 : index
    %c145 = arith.constant 145 : index
    %58 = vector.load %arg7[%c0_29, %c145] : memref<4x401xf32, #tpu.memory_space<vmem>>, vector<4x256xf32>
    %cst_30 = arith.constant 0.000000e+00 : f32
    %59 = vector.shape_cast %20 : vector<1x256xi1> to vector<1x256xi1>
    %60 = vector.broadcast %59 : vector<1x256xi1> to vector<4x256xi1>
    %61 = vector.broadcast %cst_30 : f32 to vector<4x256xf32>
    %62 = arith.select %60, %58, %61 : vector<4x256xi1>, vector<4x256xf32>
    %63 = tpu.concatenate %34, %35, %40, %45, %46, %51, %56, %57, %62 in 0 : vector<4x256xf32>, vector<4x256xf32>, vector<4x256xf32>, vector<4x256xf32>, vector<4x256xf32>, vector<4x256xf32>, vector<4x256xf32>, vector<4x256xf32>, vector<4x256xf32> -> vector<36x256xf32>
    %cst_31 = arith.constant dense<0.000000e+00> : vector<8x256xf32>
    %64 = tpu.matmul %28, %63, %cst_31 {dimension_numbers = #tpu.dot_dimension_numbers<[1], [0], [0], [1], [0, 0, 1, 1], [], []>} : vector<8x36xf32>, vector<36x256xf32>, vector<8x256xf32> -> vector<8x256xf32>
    %65 = vector.broadcast %29 : vector<8x1xf32> to vector<8x256xf32>
    %66 = arith.addf %64, %65 : vector<8x256xf32>
    %cst_32 = arith.constant 0.000000e+00 : f32
    %67 = vector.broadcast %cst_32 : f32 to vector<8x256xf32>
    %68 = arith.maximumf %66, %67 : vector<8x256xf32>
    %cst_33 = arith.constant 0.000000e+00 : f32
    %69 = vector.broadcast %cst_33 : f32 to vector<8x17xf32>
    %c0_34 = arith.constant 0 : index
    %c111_35 = arith.constant 111 : index
    %70 = vector.load %arg8[%c0_34, %c111_35] : memref<8x401xf32, #tpu.memory_space<vmem>>, vector<8x17xf32>
    tpu.vector_store %arg8[%c0_34, %c111_35], %69 {strides = array<i32>} : memref<8x401xf32, #tpu.memory_space<vmem>>, vector<8x17xf32>,
    %cst_36 = arith.constant 0.000000e+00 : f32
    %71 = vector.broadcast %cst_36 : f32 to vector<8x17xf32>
    %c0_37 = arith.constant 0 : index
    %c384_38 = arith.constant 384 : index
    %72 = vector.load %arg8[%c0_37, %c384_38] : memref<8x401xf32, #tpu.memory_space<vmem>>, vector<8x17xf32>
    tpu.vector_store %arg8[%c0_37, %c384_38], %71 {strides = array<i32>} : memref<8x401xf32, #tpu.memory_space<vmem>>, vector<8x17xf32>,
    %c0_39 = arith.constant 0 : index
    %c128_40 = arith.constant 128 : index
    %73 = vector.load %arg8[%c0_39, %c128_40] : memref<8x401xf32, #tpu.memory_space<vmem>>, vector<8x256xf32>
    tpu.vector_store %arg8[%c0_39, %c128_40], %68 {strides = array<i32>} : memref<8x401xf32, #tpu.memory_space<vmem>>, vector<8x256xf32>,
    %c0_41 = arith.constant 0 : index
    %c0_42 = arith.constant 0 : index
    %74 = vector.load %arg4[%c0_41, %c0_42] : memref<8x72xf32, #tpu.memory_space<vmem>>, vector<8x72xf32>
    %c0_43 = arith.constant 0 : index
    %c0_44 = arith.constant 0 : index
    %75 = vector.load %arg5[%c0_43, %c0_44] : memref<8x1xf32, #tpu.memory_space<vmem>>, vector<8x1xf32>
    %c0_45 = arith.constant 0 : index
    %c111_46 = arith.constant 111 : index
    %76 = vector.load %arg8[%c0_45, %c111_46] : memref<8x401xf32, #tpu.memory_space<vmem>>, vector<8x256xf32>
    %cst_47 = arith.constant 0.000000e+00 : f32
    %77 = vector.shape_cast %18 : vector<1x256xi1> to vector<1x256xi1>
    %78 = vector.broadcast %77 : vector<1x256xi1> to vector<8x256xi1>
    %79 = vector.broadcast %cst_47 : f32 to vector<8x256xf32>
    %80 = arith.select %78, %76, %79 : vector<8x256xi1>, vector<8x256xf32>
    %c0_48 = arith.constant 0 : index
    %c112_49 = arith.constant 112 : index
    %81 = vector.load %arg8[%c0_48, %c112_49] : memref<8x401xf32, #tpu.memory_space<vmem>>, vector<8x256xf32>
    %c0_50 = arith.constant 0 : index
    %c113_51 = arith.constant 113 : index
    %82 = vector.load %arg8[%c0_50, %c113_51] : memref<8x401xf32, #tpu.memory_space<vmem>>, vector<8x256xf32>
    %cst_52 = arith.constant 0.000000e+00 : f32
    %83 = vector.shape_cast %20 : vector<1x256xi1> to vector<1x256xi1>
    %84 = vector.broadcast %83 : vector<1x256xi1> to vector<8x256xi1>
    %85 = vector.broadcast %cst_52 : f32 to vector<8x256xf32>
    %86 = arith.select %84, %82, %85 : vector<8x256xi1>, vector<8x256xf32>
    %c0_53 = arith.constant 0 : index
    %c127_54 = arith.constant 127 : index
    %87 = vector.load %arg8[%c0_53, %c127_54] : memref<8x401xf32, #tpu.memory_space<vmem>>, vector<8x256xf32>
    %cst_55 = arith.constant 0.000000e+00 : f32
    %88 = vector.shape_cast %18 : vector<1x256xi1> to vector<1x256xi1>
    %89 = vector.broadcast %88 : vector<1x256xi1> to vector<8x256xi1>
    %90 = vector.broadcast %cst_55 : f32 to vector<8x256xf32>
    %91 = arith.select %89, %87, %90 : vector<8x256xi1>, vector<8x256xf32>
    %c0_56 = arith.constant 0 : index
    %c128_57 = arith.constant 128 : index
    %92 = vector.load %arg8[%c0_56, %c128_57] : memref<8x401xf32, #tpu.memory_space<vmem>>, vector<8x256xf32>
    %c0_58 = arith.constant 0 : index
    %c129_59 = arith.constant 129 : index
    %93 = vector.load %arg8[%c0_58, %c129_59] : memref<8x401xf32, #tpu.memory_space<vmem>>, vector<8x256xf32>
    %cst_60 = arith.constant 0.000000e+00 : f32
    %94 = vector.shape_cast %20 : vector<1x256xi1> to vector<1x256xi1>
    %95 = vector.broadcast %94 : vector<1x256xi1> to vector<8x256xi1>
    %96 = vector.broadcast %cst_60 : f32 to vector<8x256xf32>
    %97 = arith.select %95, %93, %96 : vector<8x256xi1>, vector<8x256xf32>
    %c0_61 = arith.constant 0 : index
    %c143_62 = arith.constant 143 : index
    %98 = vector.load %arg8[%c0_61, %c143_62] : memref<8x401xf32, #tpu.memory_space<vmem>>, vector<8x256xf32>
    %cst_63 = arith.constant 0.000000e+00 : f32
    %99 = vector.shape_cast %18 : vector<1x256xi1> to vector<1x256xi1>
    %100 = vector.broadcast %99 : vector<1x256xi1> to vector<8x256xi1>
    %101 = vector.broadcast %cst_63 : f32 to vector<8x256xf32>
    %102 = arith.select %100, %98, %101 : vector<8x256xi1>, vector<8x256xf32>
    %c0_64 = arith.constant 0 : index
    %c144_65 = arith.constant 144 : index
    %103 = vector.load %arg8[%c0_64, %c144_65] : memref<8x401xf32, #tpu.memory_space<vmem>>, vector<8x256xf32>
    %c0_66 = arith.constant 0 : index
    %c145_67 = arith.constant 145 : index
    %104 = vector.load %arg8[%c0_66, %c145_67] : memref<8x401xf32, #tpu.memory_space<vmem>>, vector<8x256xf32>
    %cst_68 = arith.constant 0.000000e+00 : f32
    %105 = vector.shape_cast %20 : vector<1x256xi1> to vector<1x256xi1>
    %106 = vector.broadcast %105 : vector<1x256xi1> to vector<8x256xi1>
    %107 = vector.broadcast %cst_68 : f32 to vector<8x256xf32>
    %108 = arith.select %106, %104, %107 : vector<8x256xi1>, vector<8x256xf32>
    %109 = tpu.concatenate %80, %81, %86, %91, %92, %97, %102, %103, %108 in 0 : vector<8x256xf32>, vector<8x256xf32>, vector<8x256xf32>, vector<8x256xf32>, vector<8x256xf32>, vector<8x256xf32>, vector<8x256xf32>, vector<8x256xf32>, vector<8x256xf32> -> vector<72x256xf32>
    %cst_69 = arith.constant dense<0.000000e+00> : vector<8x256xf32>
    %110 = tpu.matmul %74, %109, %cst_69 {dimension_numbers = #tpu.dot_dimension_numbers<[1], [0], [0], [1], [0, 0, 1, 1], [], []>} : vector<8x72xf32>, vector<72x256xf32>, vector<8x256xf32> -> vector<8x256xf32>
    %111 = vector.broadcast %75 : vector<8x1xf32> to vector<8x256xf32>
    %112 = arith.addf %110, %111 : vector<8x256xf32>
    %cst_70 = arith.constant 0.000000e+00 : f32
    %113 = vector.broadcast %cst_70 : f32 to vector<8x256xf32>
    %114 = arith.maximumf %112, %113 : vector<8x256xf32>
    %c0_71 = arith.constant 0 : index
    %c0_72 = arith.constant 0 : index
    %c0_73 = arith.constant 0 : index
    %115 = vector.load %arg6[%c0_71, %c0_72, %c0_73] : memref<1x8x256xf32, #tpu.memory_space<vmem>>, vector<1x8x256xf32>
    %116 = vector.shape_cast %115 : vector<1x8x256xf32> to vector<8x256xf32>
    %117 = vector.shape_cast %114 : vector<8x256xf32> to vector<1x8x256xf32>
    tpu.vector_store %arg6[%c0_71, %c0_72, %c0_73], %117 {strides = array<i32>} : memref<1x8x256xf32, #tpu.memory_space<vmem>>, vector<1x8x256xf32>,
    return
  }
  func.func @transform_0(%arg0: i32) -> (i32, i32, i32) {
    %c0_i32 = arith.constant 0 : i32
    %c0_i32_0 = arith.constant 0 : i32
    %c0_i32_1 = arith.constant 0 : i32
    return %arg0, %c0_i32, %c0_i32_0 : i32, i32, i32
  }
  func.func @transform_1(%arg0: i32) -> (i32, i32) {
    %c0_i32 = arith.constant 0 : i32
    %c0_i32_0 = arith.constant 0 : i32
    %c0_i32_1 = arith.constant 0 : i32
    return %c0_i32, %c0_i32_0 : i32, i32
  }
  func.func @transform_2(%arg0: i32) -> (i32, i32) {
    %c0_i32 = arith.constant 0 : i32
    %c0_i32_0 = arith.constant 0 : i32
    %c0_i32_1 = arith.constant 0 : i32
    return %c0_i32, %c0_i32_0 : i32, i32
  }
  func.func @transform_3(%arg0: i32) -> (i32, i32) {
    %c0_i32 = arith.constant 0 : i32
    %c0_i32_0 = arith.constant 0 : i32
    %c0_i32_1 = arith.constant 0 : i32
    return %c0_i32, %c0_i32_0 : i32, i32
  }
  func.func @transform_4(%arg0: i32) -> (i32, i32) {
    %c0_i32 = arith.constant 0 : i32
    %c0_i32_0 = arith.constant 0 : i32
    %c0_i32_1 = arith.constant 0 : i32
    return %c0_i32, %c0_i32_0 : i32, i32
  }
  func.func @transform_5(%arg0: i32) -> (i32, i32, i32) {
    %c0_i32 = arith.constant 0 : i32
    %c0_i32_0 = arith.constant 0 : i32
    %c0_i32_1 = arith.constant 0 : i32
    return %arg0, %c0_i32, %c0_i32_0 : i32, i32, i32
  }
}

</mosaic_0001>

<llo_original>
// kernel: tpu_custom_call.1
$region0: #{tpu_custom_call.1}
  #allocation0 [shape = 'u32[]', space=smem, size = 0x4, offset = 0x4, fixed_abs, tag = 'smem constant byte address 0x4 - core index']
  #allocation1 [shape = 'u32[144,128]{1,0:T(1,128)}', space=vmem, size = 0x12000, scoped, tag = 'internal scratch']
  #allocation2 [shape = 'f32[4,401]{1,0:T(4,128)}', space=vmem, size = 0x2000, scoped, tag = 'scratch operand']
  #allocation3 [shape = 'f32[8,401]{1,0:T(8,128)}', space=vmem, size = 0x4000, scoped, tag = 'scratch operand']
  %s0 = inlined_call_operand.vmem [shape: f32[2,4,256], index: 0, kind: input, shape index: {}]
  %s1 = inlined_call_operand.hbm [shape: f32[8,36], index: 1, kind: input, shape index: {}]
  %s2 = inlined_call_operand.vmem [shape: f32[8,1], index: 2, kind: input, shape index: {}]
  %s3 = inlined_call_operand.vmem [shape: f32[8,72], index: 3, kind: input, shape index: {}]
  %s4 = inlined_call_operand.vmem [shape: f32[8,1], index: 4, kind: input, shape index: {}]
  %s5 = inlined_call_operand.hbm [shape: f32[2,8,256], index: 5, kind: output, shape index: {}]
  %s6 = sld [smem:[#allocation0]]
  $region57: #{tpu_custom_call.1} parent=0
    _
  %s8 = ssub.s32 1, %s6
  %s9 = scalar_select 0, %s8, %s6
  $region1: #{tpu_custom_call.1} parent=0
    #allocation4 [shape = 'u8[4096]{0}', space=vmem, size = 0x1000, scoped, tag = 'input window, operand 1, single buffered']
    #allocation5 [shape = 's32[2]{0}', space=sflag, size = 0x8, scoped, tag = 'scoped memory for tpu_custom_call.1']
    #allocation6 [shape = 's32[2]{0}', space=sflag, size = 0x8, scoped, tag = 'scoped memory for tpu_custom_call.1']
    #allocation7 [shape = 'u8[16384]{0}', space=vmem, size = 0x4000, scoped, tag = 'output window, operand 0']
    %10 = vsyncpa [#allocation5], 0
    %11 = vsyncpa [#allocation6], 0
    %s12 = scalar_lea.sflag [#allocation6], 1
    %13 = vsyncpa %s12, 0
    loop: start=0, step=1, limit=4
    $region2: #{tpu_custom_call.1} parent=1 // loop_pre_header
      _
    $region3: #{tpu_custom_call.1} parent=1 // loop_header
      %s15 = sphi 0, %s19
      %p16 = scmp.ge.s32.totalorder %s15, 4
      %s25 = sphi 0, %s27
      %s28 = sphi 0, %s25
      %s29 = sphi 0, %s28
      %s45 = sphi 0, %s29
      %s49 = sphi 0, %s49
      %s51 = sphi 0, %s49
      %s52 = sphi 0, %s51
      %s66 = sphi 0, %s52
      %s70 = sphi 0, %s70
      %s72 = sphi 0, %s70
      %s73 = sphi 0, %s72
      %s87 = sphi 0, %s73
      %s91 = sphi 0, %s91
      %s93 = sphi 0, %s91
      %s94 = sphi 0, %s93
      %s108 = sphi 0, %s94
      %s112 = sphi 0, %s112
      %s114 = sphi 0, %s112
      %s115 = sphi 0, %s114
      %s129 = sphi 0, %s115
      %s135 = sphi 0, %s137
      %s138 = sphi 0, %s135
      %s139 = sphi 0, %s138
      %s155 = sphi 0, %s139
    $region4: #{tpu_custom_call.1} parent=1 // loop_header_branch
      %18 = sbr.rel (%p16) target = $region8
    $region5: #{tpu_custom_call.1} parent=1 // loop_body
      %s20 = ssub.s32 %s15, 1
      %s21 = ssub.s32 %s15, 2
      %s22 = sadd.s32 %s15, 1
      %s23 = ssub.s32 %s15, %s22
      %p24 = scmp.eq.s32.totalorder %s23, 0
      %s26 = sadd.s32 %s25, 1
      %s27 = scalar_select %p24, %s25, %s26
      %p30 = pneg %p24
      %p31 = scmp.eq.s32.totalorder %s15, 1
      %p32 = por %p30, %p31
      %p33 = scmp.ne.s32.totalorder %s25, %s28
      %p34 = scmp.eq.s32.totalorder %s15, 0
      %p35 = por %p33, %p34
      %p36 = scmp.ne.s32.totalorder %s25, %s28
      %p37 = scmp.eq.s32.totalorder %s20, 1
      %p38 = por %p36, %p37
      %p39 = scmp.ne.s32.totalorder %s28, %s29
      %p40 = scmp.eq.s32.totalorder %s20, 0
      %p41 = por %p39, %p40
      %p42 = scmp.ne.s32.totalorder %s28, %s29
      %p43 = scmp.eq.s32.totalorder %s21, 1
      %p44 = por %p42, %p43
      %p46 = scmp.ne.s32.totalorder %s29, %s45
      %p47 = scmp.eq.s32.totalorder %s21, 0
      %p48 = por %p46, %p47
      %s50 = sadd.s32 %s49, 1
      %p53 = scmp.eq.s32.totalorder %s15, 1
      %p54 = scmp.ne.s32.totalorder %s49, %s51
      %p55 = scmp.eq.s32.totalorder %s15, 0
      %p56 = por %p54, %p55
      %p57 = scmp.ne.s32.totalorder %s49, %s51
      %p58 = scmp.eq.s32.totalorder %s20, 1
      %p59 = por %p57, %p58
      %p60 = scmp.ne.s32.totalorder %s51, %s52
      %p61 = scmp.eq.s32.totalorder %s20, 0
      %p62 = por %p60, %p61
      %p63 = scmp.ne.s32.totalorder %s51, %s52
      %p64 = scmp.eq.s32.totalorder %s21, 1
      %p65 = por %p63, %p64
      %p67 = scmp.ne.s32.totalorder %s52, %s66
      %p68 = scmp.eq.s32.totalorder %s21, 0
      %p69 = por %p67, %p68
      %s71 = sadd.s32 %s70, 1
      %p74 = scmp.eq.s32.totalorder %s15, 1
      %p75 = scmp.ne.s32.totalorder %s70, %s72
      %p76 = scmp.eq.s32.totalorder %s15, 0
      %p77 = por %p75, %p76
      %p78 = scmp.ne.s32.totalorder %s70, %s72
      %p79 = scmp.eq.s32.totalorder %s20, 1
      %p80 = por %p78, %p79
      %p81 = scmp.ne.s32.totalorder %s72, %s73
      %p82 = scmp.eq.s32.totalorder %s20, 0
      %p83 = por %p81, %p82
      %p84 = scmp.ne.s32.totalorder %s72, %s73
      %p85 = scmp.eq.s32.totalorder %s21, 1
      %p86 = por %p84, %p85
      %p88 = scmp.ne.s32.totalorder %s73, %s87
      %p89 = scmp.eq.s32.totalorder %s21, 0
      %p90 = por %p88, %p89
      %s92 = sadd.s32 %s91, 1
      %p95 = scmp.eq.s32.totalorder %s15, 1
      %p96 = scmp.ne.s32.totalorder %s91, %s93
      %p97 = scmp.eq.s32.totalorder %s15, 0
      %p98 = por %p96, %p97
      %p99 = scmp.ne.s32.totalorder %s91, %s93
      %p100 = scmp.eq.s32.totalorder %s20, 1
      %p101 = por %p99, %p100
      %p102 = scmp.ne.s32.totalorder %s93, %s94
      %p103 = scmp.eq.s32.totalorder %s20, 0
      %p104 = por %p102, %p103
      %p105 = scmp.ne.s32.totalorder %s93, %s94
      %p106 = scmp.eq.s32.totalorder %s21, 1
      %p107 = por %p105, %p106
      %p109 = scmp.ne.s32.totalorder %s94, %s108
      %p110 = scmp.eq.s32.totalorder %s21, 0
      %p111 = por %p109, %p110
      %s113 = sadd.s32 %s112, 1
      %p116 = scmp.eq.s32.totalorder %s15, 1
      %p117 = scmp.ne.s32.totalorder %s112, %s114
      %p118 = scmp.eq.s32.totalorder %s15, 0
      %p119 = por %p117, %p118
      %p120 = scmp.ne.s32.totalorder %s112, %s114
      %p121 = scmp.eq.s32.totalorder %s20, 1
      %p122 = por %p120, %p121
      %p123 = scmp.ne.s32.totalorder %s114, %s115
      %p124 = scmp.eq.s32.totalorder %s20, 0
      %p125 = por %p123, %p124
      %p126 = scmp.ne.s32.totalorder %s114, %s115
      %p127 = scmp.eq.s32.totalorder %s21, 1
      %p128 = por %p126, %p127
      %p130 = scmp.ne.s32.totalorder %s115, %s129
      %p131 = scmp.eq.s32.totalorder %s21, 0
      %p132 = por %p130, %p131
      %s133 = ssub.s32 %s15, %s22
      %p134 = scmp.eq.s32.totalorder %s133, 0
      %s136 = sadd.s32 %s135, 1
      %s137 = scalar_select %p134, %s135, %s136
      %p140 = pneg %p134
      %p141 = scmp.eq.s32.totalorder %s15, 1
      %p142 = por %p140, %p141
      %p143 = scmp.ne.s32.totalorder %s135, %s138
      %p144 = scmp.eq.s32.totalorder %s15, 0
      %p145 = por %p143, %p144
      %p146 = scmp.ne.s32.totalorder %s135, %s138
      %p147 = scmp.eq.s32.totalorder %s20, 1
      %p148 = por %p146, %p147
      %p149 = scmp.ne.s32.totalorder %s138, %s139
      %p150 = scmp.eq.s32.totalorder %s20, 0
      %p151 = por %p149, %p150
      %p152 = scmp.ne.s32.totalorder %s138, %s139
      %p153 = scmp.eq.s32.totalorder %s21, 1
      %p154 = por %p152, %p153
      %p156 = scmp.ne.s32.totalorder %s139, %s155
      %p157 = scmp.eq.s32.totalorder %s21, 0
      %p158 = por %p156, %p157
      %p159 = scmp.le.s32.totalorder 1, %s15
      %p160 = scmp.lt.s32.totalorder %s15, 3
      %p161 = pnand %p159, %p160
      %p162 = pneg %p161
      // Predicated region
      $region9: #{tpu_custom_call.1} parent=5 // pred_check
        _
      $region10: #{tpu_custom_call.1} parent=5 // pred_check_branch
        %164 = sbr.rel (%p161) target = $region12
      $region11: #{tpu_custom_call.1} parent=5 // pred_region
        %s165 = ssub.s32 %s15, 1
        // Predicated region
        $region13: #{tpu_custom_call.1} parent=11 // pred_check
          %p166 = pneg %p62
        $region14: #{tpu_custom_call.1} parent=11 // pred_check_branch
          %168 = sbr.rel (%p166) target = $region16
        $region15: #{tpu_custom_call.1} parent=11 // pred_region
          %s170 = ssub.s32 128, 128
          %171 = vsyncadd [#allocation5], %s170
          %s173 = sshll.u32 [#allocation4], 4
          %s174 = int_to_ptr.vmem [resolvable:$true] %s173
          %176 = dma.hbm_to_vmem [thread:$0]  %s1, 128, %s174, [#allocation5]
        $region16: #{tpu_custom_call.1} parent=11 // pred_fallthru
          _
        // Predicated region
        $region17: #{tpu_custom_call.1} parent=11 // pred_check
          %p177 = pneg %p83
        $region18: #{tpu_custom_call.1} parent=11 // pred_check_branch
          %179 = sbr.rel (%p177) target = $region20
        $region19: #{tpu_custom_call.1} parent=11 // pred_region
          _
        $region20: #{tpu_custom_call.1} parent=11 // pred_fallthru
          _
        // Predicated region
        $region21: #{tpu_custom_call.1} parent=11 // pred_check
          %p180 = pneg %p104
        $region22: #{tpu_custom_call.1} parent=11 // pred_check_branch
          %182 = sbr.rel (%p180) target = $region24
        $region23: #{tpu_custom_call.1} parent=11 // pred_region
          _
        $region24: #{tpu_custom_call.1} parent=11 // pred_fallthru
          _
        // Predicated region
        $region25: #{tpu_custom_call.1} parent=11 // pred_check
          %p183 = pneg %p125
        $region26: #{tpu_custom_call.1} parent=11 // pred_check_branch
          %185 = sbr.rel (%p183) target = $region28
        $region27: #{tpu_custom_call.1} parent=11 // pred_region
          _
        $region28: #{tpu_custom_call.1} parent=11 // pred_fallthru
          _
      $region12: #{tpu_custom_call.1} parent=5 // pred_fallthru
        _
      %p186 = scmp.lt.s32.totalorder %s15, 2
      // Predicated region
      $region29: #{tpu_custom_call.1} parent=5 // pred_check
        %p187 = pneg %p186
      $region30: #{tpu_custom_call.1} parent=5 // pred_check_branch
        %189 = sbr.rel (%p187) target = $region32
      $region31: #{tpu_custom_call.1} parent=5 // pred_region
        // Predicated region
        $region33: #{tpu_custom_call.1} parent=31 // pred_check
          %p190 = pneg %p35
        $region34: #{tpu_custom_call.1} parent=31 // pred_check_branch
          %192 = sbr.rel (%p190) target = $region36
        $region35: #{tpu_custom_call.1} parent=31 // pred_region
          %p193 = scmp.lt.s32.totalorder %s15, 1
          %s194 = scalar_select %p193, %s15, 1
          %s195 = smul.addr %s194, 2
          %s196 = smul.addr %s195, 4
          %s197 = scalar_lea.vmem %s0, %s196
        $region36: #{tpu_custom_call.1} parent=31 // pred_fallthru
          _
      $region32: #{tpu_custom_call.1} parent=5 // pred_fallthru
        _
      %p198 = scmp.le.s32.totalorder 1, %s15
      %p199 = scmp.lt.s32.totalorder %s15, 3
      %p200 = pnand %p198, %p199
      %p201 = pneg %p200
      // Predicated region
      $region37: #{tpu_custom_call.1} parent=5 // pred_check
        _
      $region38: #{tpu_custom_call.1} parent=5 // pred_check_branch
        %203 = sbr.rel (%p200) target = $region40
      $region39: #{tpu_custom_call.1} parent=5 // pred_region
        %s204 = ssub.s32 %s15, 1
        // Predicated region
        $region41: #{tpu_custom_call.1} parent=39 // pred_check
          %p205 = pneg %p62
        $region42: #{tpu_custom_call.1} parent=39 // pred_check_branch
          %207 = sbr.rel (%p205) target = $region44
        $region43: #{tpu_custom_call.1} parent=39 // pred_region
          %208 = dma.done [#allocation5], 128
        $region44: #{tpu_custom_call.1} parent=39 // pred_fallthru
          _
        %p209 = scmp.lt.s32.totalorder %s20, 1
        %s210 = scalar_select %p209, %s20, 1
        %s211 = smul.addr %s210, 2
        %s212 = smul.addr %s211, 4
        %s213 = scalar_lea.vmem %s0, %s212
        %p214 = pneg %p41
        %p215 = pneg %p38
        %p216 = pneg %p62
        %p217 = pneg %p59
        %p218 = pneg %p83
        %p219 = pneg %p80
        %p220 = pneg %p104
        %p221 = pneg %p101
        %p222 = pneg %p125
        %p223 = pneg %p122
        %p224 = pneg %p151
        %p225 = pneg %p148
        %s226 = sand.u32 %s138, 1
        %s227 = scalar_lea.sflag [#allocation6], %s226
        %s228 = sand.u32 %s138, 1
        %s229 = smul.addr %s228, 16
        %s230 = scalar_lea.vmem [#allocation7], %s229
        %p231 = scmp.lt.s32.totalorder %s20, 1
        %s232 = scalar_select %p231, %s20, 1
        %s233 = smul.addr %s232, 2
        %s234 = smul.addr %s233, 4
        %s235 = scalar_lea.vmem %s0, %s234
        %v236 = vlaneseq
        %v237 = vand.u32 %v236, 127
        %v238 = vadd.s32 %v237, 128
        %vm239 = vcmp.lt.s32.totalorder %v237, 0
        %v240 = vsub.s32 0, %v237
        %v241 = vsel %vm239, %v240, %v237
        %v242 = vshrl.u32 %v241, 4
        %v243 = vand.u32 %v241, 15
        %v244 = vsub.s32 0, %v243
        %v245 = vsel %vm239, %v244, %v243
        %vm246 = vcmp.lt.s32.totalorder %v238, 0
        %v247 = vsub.s32 0, %v238
        %v248 = vsel %vm246, %v247, %v238
        %v249 = vshrl.u32 %v248, 4
        %v250 = vand.u32 %v248, 15
        %v251 = vsub.s32 0, %v250
        %v252 = vsel %vm246, %v251, %v250
        %vm253 = vcmp.ne.s32.totalorder %v245, 0
        %vm254 = vcmp.ne.s32.totalorder %v252, 0
        %vm255 = vcmp.lt.s32.totalorder %v245, 0
        %vm256 = vcmp.lt.s32.totalorder %v252, 0
        %vm257 = vmand %vm255, %vm253
        %vm258 = vmand %vm256, %vm254
        %v259 = vadd.s32 %v245, 16
        %v260 = vadd.s32 %v252, 16
        %v261 = vsel %vm257, %v259, %v245
        %v262 = vsel %vm258, %v260, %v252
        %vm263 = vcmp.ne.s32.totalorder %v261, 0
        %vm264 = vcmp.ne.s32.totalorder %v262, 0
        %vm265 = vcmp.ne.s32.totalorder %v261, 15
        %vm266 = vcmp.ne.s32.totalorder %v262, 15
        %v267 = vld [vmem:[%s235] sm:$0xff]
        %vm268 = vcmask 1044344
        %269 = vst.msk [vmem:[#allocation2] sm:$0xf] %vm268, 0.0
        %vm270 = vcmask 134144
        %271 = vst.msk [vmem:[#allocation2 + $0xc] sm:$0xf] %vm270, 0.0
        %272 = vst [vmem:[#allocation2 + $0x4] sm:$0xff] %v267
        %v273 = vld [vmem:[#allocation4] sm:$0xff]
        %v274 = vld [vmem:[%s2] sm:$0xff]
        %v275 = vld [vmem:[#allocation2] sm:$0xff]
        %v276 = vld [vmem:[#allocation2 + $0x8] sm:$0xf]
        %v277 = vsel %vm263, 1, 0
        %v278 = vsel %vm264, 1, 0
        %vm279 = vcmp.eq.s32.totalorder %v277, 1
        %vm280 = vcmp.eq.s32.totalorder %v278, 1
        %v283 = vcombine.high %v275, %v275
        %284 = vrot.lane.b32.xlu0 %v275, 17
        %v285 = vpop.permute.xlu0 %284
        %286 = vrot.lane.b32.xlu0 %v283, 17
        %v287 = vpop.permute.xlu0 %286
        %288 = vrot.lane.b32.xlu0 %v276, 17
        %v289 = vpop.permute.xlu0 %288
        %vm290 = vcmask 138240
        %v291 = vsel %vm290, %v285, %v287
        %v292 = vsel %vm290, %v287, %v289
        %v295 = vsel %vm279, %v291, 0.0
        %v296 = vsel %vm280, %v292, 0.0
        %v297 = vsel %vm265, 1, 0
        %v298 = vsel %vm266, 1, 0
        %vm299 = vcmp.eq.s32.totalorder %v297, 1
        %vm300 = vcmp.eq.s32.totalorder %v298, 1
        %301 = vrot.lane.b32.xlu0 %v275, 15
        %v302 = vpop.permute.xlu0 %301
        %303 = vrot.lane.b32.xlu0 %v283, 15
        %v304 = vpop.permute.xlu0 %303
        %305 = vrot.lane.b32.xlu0 %v276, 15
        %v306 = vpop.permute.xlu0 %305
        %vm307 = vcmask 121856
        %v308 = vsel %vm307, %v302, %v304
        %v309 = vsel %vm307, %v304, %v306
        %v312 = vsel %vm299, %v308, 0.0
        %v313 = vsel %vm300, %v309, 0.0
        %314 = vrot.lane.b32.xlu0 %v275, 1
        %v315 = vpop.permute.xlu0 %314
        %316 = vrot.lane.b32.xlu0 %v283, 1
        %v317 = vpop.permute.xlu0 %316
        %318 = vrot.lane.b32.xlu0 %v276, 1
        %v319 = vpop.permute.xlu0 %318
        %vm320 = vcmask 7168
        %v321 = vsel %vm320, %v315, %v317
        %v322 = vsel %vm320, %v317, %v319
        %v325 = vsel %vm279, %v321, 0.0
        %v326 = vsel %vm280, %v322, 0.0
        %v327 = vld [vmem:[#allocation2 + $0x4] sm:$0xff]
        %v328 = vld [vmem:[#allocation2 + $0xc] sm:$0xf]
        %v331 = vcombine.high %v327, %v327
        %332 = vrot.lane.b32.xlu0 %v327, 127
        %v333 = vpop.permute.xlu0 %332
        %334 = vrot.lane.b32.xlu0 %v331, 127
        %v335 = vpop.permute.xlu0 %334
        %336 = vrot.lane.b32.xlu0 %v328, 127
        %v337 = vpop.permute.xlu0 %336
        %vm338 = vcmask 1039360
        %v339 = vsel %vm338, %v333, %v335
        %v340 = vsel %vm338, %v335, %v337
        %v343 = vsel %vm299, %v339, 0.0
        %v344 = vsel %vm300, %v340, 0.0
        %345 = vrot.lane.b32.xlu0 %v327, 113
        %v346 = vpop.permute.xlu0 %345
        %347 = vrot.lane.b32.xlu0 %v331, 113
        %v348 = vpop.permute.xlu0 %347
        %349 = vrot.lane.b32.xlu0 %v328, 113
        %v350 = vpop.permute.xlu0 %349
        %vm351 = vcmask 924672
        %v352 = vsel %vm351, %v346, %v348
        %v353 = vsel %vm351, %v348, %v350
        %v356 = vsel %vm279, %v352, 0.0
        %v357 = vsel %vm280, %v353, 0.0
        %358 = vrot.lane.b32.xlu0 %v327, 111
        %v359 = vpop.permute.xlu0 %358
        %360 = vrot.lane.b32.xlu0 %v331, 111
        %v361 = vpop.permute.xlu0 %360
        %362 = vrot.lane.b32.xlu0 %v328, 111
        %v363 = vpop.permute.xlu0 %362
        %vm364 = vcmask 908288
        %v365 = vsel %vm364, %v359, %v361
        %v366 = vsel %vm364, %v361, %v363
        %v369 = vsel %vm299, %v365, 0.0
        %v370 = vsel %vm300, %v366, 0.0
        %v371 = vcombine.low %v275, %v275
        %v372 = vcombine.low %v276, %v276
        %373 = vrot.lane.b32.xlu0 %v371, 16
        %v374 = vpop.permute.xlu0 %373
        %375 = vrot.lane.b32.xlu0 %v275, 16
        %v376 = vpop.permute.xlu0 %375
        %377 = vrot.lane.b32.xlu0 %v372, 16
        %v378 = vpop.permute.xlu0 %377
        %vm379 = vcmask 130048
        %v380 = vsel %vm379, %v374, %v376
        %v381 = vsel %vm379, %v376, %v378
        %v386 = vrot.slane %v325, 4
        %v387 = vrot.slane %v326, 4
        %v393 = vrot.slane %v343, 4
        %v394 = vrot.slane %v344, 4
        %v397 = vcombine.low %v327, %v327
        %v398 = vcombine.low %v328, %v328
        %399 = vrot.lane.b32.xlu0 %v397, 112
        %v400 = vpop.permute.xlu0 %399
        %401 = vrot.lane.b32.xlu0 %v327, 112
        %v402 = vpop.permute.xlu0 %401
        %403 = vrot.lane.b32.xlu0 %v398, 112
        %v404 = vpop.permute.xlu0 %403
        %vm405 = vcmask 916480
        %v406 = vsel %vm405, %v400, %v402
        %v407 = vsel %vm405, %v402, %v404
        %vm410 = vcmask 1043456
        %v411 = vsel %vm410, %v295, %v380
        %v412 = vsel %vm410, %v296, %v381
        %v413 = vsel %vm410, %v312, %v386
        %v414 = vsel %vm410, %v313, %v387
        %v415 = vsel %vm410, %v327, %v393
        %v416 = vsel %vm410, %v331, %v394
        %v417 = vsel %vm410, %v356, %v406
        %v418 = vsel %vm410, %v357, %v407
        %420 = vset.pattern.permute.xlu0 0
        %421 = vperm.xlu0 %420, %v274
        %v422 = vpop.permute.xlu0 %421
        %vm424 = vcmask 293888
        %v426 = vsel %vm424, %v273, 0
        %v429 = vsel %vm410, %v369, 0
        %v432 = vsel %vm410, %v370, 0
        %434 = vmatprep.subr.mxu0 %v412
        %435 = vmatpush1.msra.mxu0 %v411
        %436 = vmatprep.subr.mxu0 %v414
        %437 = vmatpush1.msra.mxu0 %v413
        %438 = vmatprep.subr.mxu0 %v416
        %439 = vmatpush1.msra.mxu0 %v415
        %440 = vmatprep.subr.mxu0 %v418
        %441 = vmatpush1.msra.mxu0 %v417
        %442 = vmatprep.subr.mxu0 %v432
        %443 = vmatpush1.msra.mxu0 %v429
        %444 = vmatprep.subr.mxu0 0.0
        %445 = vmatpush1.msra.mxu0 0.0
        %446 = vmatprep.subr.mxu0 0.0
        %447 = vmatpush1.msra.mxu0 0.0
        %448 = vmatprep.subr.mxu0 0.0
        %449 = vmatpush1.msra.mxu0 0.0
        %450 = vmatprep.subr.mxu0 0.0
        %451 = vmatpush1.msra.mxu0 0.0
        %452 = vmatprep.subr.mxu0 0.0
        %453 = vmatpush1.msra.mxu0 0.0
        %454 = vmatprep.subr.mxu0 0.0
        %455 = vmatpush1.msra.mxu0 0.0
        %456 = vmatprep.subr.mxu0 0.0
        %457 = vmatpush1.msra.mxu0 0.0
        %458 = vmatprep.subr.mxu0 0.0
        %459 = vmatpush1.msra.mxu0 0.0
        %460 = vmatprep.subr.mxu0 0.0
        %461 = vmatpush1.msra.mxu0 0.0
        %462 = vmatprep.subr.mxu0 0.0
        %463 = vmatpush1.msra.mxu0 0.0
        %464 = vmatprep.subr.mxu0 0.0
        %465 = vmatpush1.msra.mxu0 0.0
        %466 = vmatprep.subr.mxu0 0.0
        %467 = vmatpush1.msra.mxu0 0.0
        %468 = vmatprep.subr.mxu0 0.0
        %469 = vmatpush1.msra.mxu0 0.0
        %470 = vmatprep.subr.mxu0 0.0
        %471 = vmatpush1.msra.mxu0 0.0
        %472 = vmatprep.subr.mxu0 0.0
        %473 = vmatpush1.msra.mxu0 0.0
        %474 = vmatprep.subr.mxu0 0.0
        %475 = vmatpush1.msra.mxu0 0.0
        %476 = vmatprep.subr.mxu0 0.0
        %477 = vmatpush1.msra.mxu0 0.0
        %478 = vmatprep.subr.mxu0 0.0
        %479 = vmatpush1.msra.mxu0 0.0
        %480 = vmatprep.subr.mxu0 0.0
        %481 = vmatpush1.msra.mxu0 0.0
        %482 = vmatprep.subr.mxu0 0.0
        %483 = vmatpush1.msra.mxu0 0.0
        %484 = vmatprep.subr.mxu0 0.0
        %485 = vmatpush1.msra.mxu0 0.0
        %486 = vmatprep.subr.mxu0 0.0
        %487 = vmatpush1.msra.mxu0 0.0
        %488 = vmatprep.subr.mxu0 0.0
        %489 = vmatpush1.msra.mxu0 0.0
        %490 = vmatprep.subr.mxu0 0.0
        %491 = vmatpush1.msra.mxu0 0.0
        %492 = vmatprep.subr.mxu0 0.0
        %493 = vmatpush1.msra.mxu0 0.0
        %494 = vmatprep.subr.mxu0 0.0
        %495 = vmatpush1.msra.mxu0 0.0
        %496 = vmatprep.subr.mxu0 0.0
        %497 = vmatpush1.msra.mxu0 0.0
        %498 = vmatprep.mubr.f32.mxu0 0.0
        %499 = vmatmul.mubr.f32.gmra.mrb[0].mxu0 %v426
        %v500 = vpop.f32.mrb[0].mxu0
        %v501 = vadd.f32 %v422, %v500
        %v502 = vpop.f32.mrb[0].mxu0
        %v503 = vadd.f32 %v422, %v502
        %504 = vdwg.mxu0
        %v505 = vmax.f32 %v501, 0.0
        %v506 = vmax.f32 %v503, 0.0
        %vm507 = vcmask 1048440
        %508 = vst.msk [vmem:[#allocation3] sm:$0xff] %vm507, 0.0
        %509 = vst.msk [vmem:[#allocation3 + $0x18] sm:$0xff] %vm290, 0.0
        %510 = vst [vmem:[#allocation3 + $0x8] sm:$0xff] %v505
        %511 = vst [vmem:[#allocation3 + $0x10] sm:$0xff] %v506
        %v512 = vld [vmem:[%s3] sm:$0xff]
        %v513 = vld [vmem:[%s4] sm:$0xff]
        %v514 = vld [vmem:[#allocation3] sm:$0xff]
        %v515 = vld [vmem:[#allocation3 + $0x8] sm:$0xff]
        %v516 = vld [vmem:[#allocation3 + $0x10] sm:$0xff]
        %520 = vrot.lane.b32.xlu0 %v514, 17
        %v521 = vpop.permute.xlu0 %520
        %522 = vrot.lane.b32.xlu0 %v515, 17
        %v523 = vpop.permute.xlu0 %522
        %524 = vrot.lane.b32.xlu0 %v516, 17
        %v525 = vpop.permute.xlu0 %524
        %v526 = vsel %vm290, %v521, %v523
        %v527 = vsel %vm290, %v523, %v525
        %v530 = vsel %vm279, %v526, 0.0
        %v531 = vsel %vm280, %v527, 0.0
        %532 = vrot.lane.b32.xlu0 %v514, 15
        %v533 = vpop.permute.xlu0 %532
        %534 = vrot.lane.b32.xlu0 %v515, 15
        %v535 = vpop.permute.xlu0 %534
        %536 = vrot.lane.b32.xlu0 %v516, 15
        %v537 = vpop.permute.xlu0 %536
        %v538 = vsel %vm307, %v533, %v535
        %v539 = vsel %vm307, %v535, %v537
        %v542 = vsel %vm299, %v538, 0.0
        %v543 = vsel %vm300, %v539, 0.0
        %544 = vrot.lane.b32.xlu0 %v514, 1
        %v545 = vpop.permute.xlu0 %544
        %546 = vrot.lane.b32.xlu0 %v515, 1
        %v547 = vpop.permute.xlu0 %546
        %548 = vrot.lane.b32.xlu0 %v516, 1
        %v549 = vpop.permute.xlu0 %548
        %v550 = vsel %vm320, %v545, %v547
        %v551 = vsel %vm320, %v547, %v549
        %v554 = vsel %vm279, %v550, 0.0
        %v555 = vsel %vm280, %v551, 0.0
        %v556 = vld [vmem:[#allocation3 + $0x18] sm:$0xff]
        %558 = vrot.lane.b32.xlu0 %v515, 127
        %v559 = vpop.permute.xlu0 %558
        %560 = vrot.lane.b32.xlu0 %v516, 127
        %v561 = vpop.permute.xlu0 %560
        %562 = vrot.lane.b32.xlu0 %v556, 127
        %v563 = vpop.permute.xlu0 %562
        %v564 = vsel %vm338, %v559, %v561
        %v565 = vsel %vm338, %v561, %v563
        %v568 = vsel %vm299, %v564, 0.0
        %v569 = vsel %vm300, %v565, 0.0
        %570 = vrot.lane.b32.xlu0 %v515, 113
        %v571 = vpop.permute.xlu0 %570
        %572 = vrot.lane.b32.xlu0 %v516, 113
        %v573 = vpop.permute.xlu0 %572
        %574 = vrot.lane.b32.xlu0 %v556, 113
        %v575 = vpop.permute.xlu0 %574
        %v576 = vsel %vm351, %v571, %v573
        %v577 = vsel %vm351, %v573, %v575
        %v580 = vsel %vm279, %v576, 0.0
        %v581 = vsel %vm280, %v577, 0.0
        %582 = vrot.lane.b32.xlu0 %v515, 111
        %v583 = vpop.permute.xlu0 %582
        %584 = vrot.lane.b32.xlu0 %v516, 111
        %v585 = vpop.permute.xlu0 %584
        %586 = vrot.lane.b32.xlu0 %v556, 111
        %v587 = vpop.permute.xlu0 %586
        %v588 = vsel %vm364, %v583, %v585
        %v589 = vsel %vm364, %v585, %v587
        %v592 = vsel %vm299, %v588, 0.0
        %v593 = vsel %vm300, %v589, 0.0
        %594 = vrot.lane.b32.xlu0 %v514, 16
        %v595 = vpop.permute.xlu0 %594
        %596 = vrot.lane.b32.xlu0 %v515, 16
        %v597 = vpop.permute.xlu0 %596
        %598 = vrot.lane.b32.xlu0 %v516, 16
        %v599 = vpop.permute.xlu0 %598
        %v600 = vsel %vm379, %v595, %v597
        %v601 = vsel %vm379, %v597, %v599
        %604 = vrot.lane.b32.xlu0 %v515, 112
        %v605 = vpop.permute.xlu0 %604
        %606 = vrot.lane.b32.xlu0 %v516, 112
        %v607 = vpop.permute.xlu0 %606
        %608 = vrot.lane.b32.xlu0 %v556, 112
        %v609 = vpop.permute.xlu0 %608
        %v610 = vsel %vm405, %v605, %v607
        %v611 = vsel %vm405, %v607, %v609
        %615 = vset.pattern.permute.xlu0 0
        %616 = vperm.xlu0 %615, %v513
        %v617 = vpop.permute.xlu0 %616
        %vm619 = vcmask 588800
        %v621 = vsel %vm619, %v512, 0
        %623 = vmatprep.subr.mxu0 %v531
        %624 = vmatpush1.msra.mxu0 %v530
        %625 = vmatprep.subr.mxu0 %v601
        %626 = vmatpush1.msra.mxu0 %v600
        %627 = vmatprep.subr.mxu0 %v543
        %628 = vmatpush1.msra.mxu0 %v542
        %629 = vmatprep.subr.mxu0 %v555
        %630 = vmatpush1.msra.mxu0 %v554
        %631 = vmatprep.subr.mxu0 %v516
        %632 = vmatpush1.msra.mxu0 %v515
        %633 = vmatprep.subr.mxu0 %v569
        %634 = vmatpush1.msra.mxu0 %v568
        %635 = vmatprep.subr.mxu0 %v581
        %636 = vmatpush1.msra.mxu0 %v580
        %637 = vmatprep.subr.mxu0 %v611
        %638 = vmatpush1.msra.mxu0 %v610
        %639 = vmatprep.subr.mxu0 %v593
        %640 = vmatpush1.msra.mxu0 %v592
        %641 = vmatprep.subr.mxu0 0.0
        %642 = vmatpush1.msra.mxu0 0.0
        %643 = vmatprep.subr.mxu0 0.0
        %644 = vmatpush1.msra.mxu0 0.0
        %645 = vmatprep.subr.mxu0 0.0
        %646 = vmatpush1.msra.mxu0 0.0
        %647 = vmatprep.subr.mxu0 0.0
        %648 = vmatpush1.msra.mxu0 0.0
        %649 = vmatprep.subr.mxu0 0.0
        %650 = vmatpush1.msra.mxu0 0.0
        %651 = vmatprep.subr.mxu0 0.0
        %652 = vmatpush1.msra.mxu0 0.0
        %653 = vmatprep.subr.mxu0 0.0
        %654 = vmatpush1.msra.mxu0 0.0
        %655 = vmatprep.subr.mxu0 0.0
        %656 = vmatpush1.msra.mxu0 0.0
        %657 = vmatprep.subr.mxu0 0.0
        %658 = vmatpush1.msra.mxu0 0.0
        %659 = vmatprep.subr.mxu0 0.0
        %660 = vmatpush1.msra.mxu0 0.0
        %661 = vmatprep.subr.mxu0 0.0
        %662 = vmatpush1.msra.mxu0 0.0
        %663 = vmatprep.subr.mxu0 0.0
        %664 = vmatpush1.msra.mxu0 0.0
        %665 = vmatprep.subr.mxu0 0.0
        %666 = vmatpush1.msra.mxu0 0.0
        %667 = vmatprep.subr.mxu0 0.0
        %668 = vmatpush1.msra.mxu0 0.0
        %669 = vmatprep.subr.mxu0 0.0
        %670 = vmatpush1.msra.mxu0 0.0
        %671 = vmatprep.subr.mxu0 0.0
        %672 = vmatpush1.msra.mxu0 0.0
        %673 = vmatprep.subr.mxu0 0.0
        %674 = vmatpush1.msra.mxu0 0.0
        %675 = vmatprep.subr.mxu0 0.0
        %676 = vmatpush1.msra.mxu0 0.0
        %677 = vmatprep.subr.mxu0 0.0
        %678 = vmatpush1.msra.mxu0 0.0
        %679 = vmatprep.subr.mxu0 0.0
        %680 = vmatpush1.msra.mxu0 0.0
        %681 = vmatprep.subr.mxu0 0.0
        %682 = vmatpush1.msra.mxu0 0.0
        %683 = vmatprep.subr.mxu0 0.0
        %684 = vmatpush1.msra.mxu0 0.0
        %685 = vmatprep.subr.mxu0 0.0
        %686 = vmatpush1.msra.mxu0 0.0
        %687 = vmatprep.mubr.f32.mxu0 0.0
        %688 = vmatmul.mubr.f32.gmra.mrb[0].mxu0 %v621
        %v689 = vpop.f32.mrb[0].mxu0
        %v690 = vadd.f32 %v617, %v689
        %v691 = vpop.f32.mrb[0].mxu0
        %v692 = vadd.f32 %v617, %v691
        %693 = vdwg.mxu0
        %v694 = vmax.f32 %v690, 0.0
        %v695 = vmax.f32 %v692, 0.0
        %696 = vst [vmem:[%s230] sm:$0xff] %v694
        %697 = vst [vmem:[%s230 + $0x8] sm:$0xff] %v695
        %s698 = sand.u32 %s138, 1
        %s699 = scalar_lea.sflag [#allocation6], %s698
        %s700 = sand.u32 %s138, 1
        %s701 = smul.addr %s700, 16
        %s702 = scalar_lea.vmem [#allocation7], %s701
        // Predicated region
        $region45: #{tpu_custom_call.1} parent=39 // pred_check
          %p703 = pneg %p148
        $region46: #{tpu_custom_call.1} parent=39 // pred_check_branch
          %705 = sbr.rel (%p703) target = $region48
        $region47: #{tpu_custom_call.1} parent=39 // pred_region
          %s707 = ssub.s32 256, 256
          %708 = vsyncadd %s699, %s707
          %s709 = smul.addr %s20, 2
          %s710 = smul.addr %s709, 128
          %s711 = scalar_lea.hbm %s5, %s710
          %s713 = sshll.u32 %s702, 4
          %s714 = int_to_ptr.vmem [resolvable:$true] %s713
          %716 = dma.vmem_to_hbm [thread:$0]  %s714, 256, %s711, %s699
        $region48: #{tpu_custom_call.1} parent=39 // pred_fallthru
          _
      $region40: #{tpu_custom_call.1} parent=5 // pred_fallthru
        _
      %p717 = scmp.le.s32.totalorder 2, %s15
      // Predicated region
      $region49: #{tpu_custom_call.1} parent=5 // pred_check
        %p718 = pneg %p717
      $region50: #{tpu_custom_call.1} parent=5 // pred_check_branch
        %720 = sbr.rel (%p718) target = $region52
      $region51: #{tpu_custom_call.1} parent=5 // pred_region
        %s721 = ssub.s32 %s15, 2
        // Predicated region
        $region53: #{tpu_custom_call.1} parent=51 // pred_check
          %p722 = pneg %p154
        $region54: #{tpu_custom_call.1} parent=51 // pred_check_branch
          %724 = sbr.rel (%p722) target = $region56
        $region55: #{tpu_custom_call.1} parent=51 // pred_region
          %s725 = sand.u32 %s139, 1
          %s726 = scalar_lea.sflag [#allocation6], %s725
          %s727 = sand.u32 %s139, 1
          %s728 = smul.addr %s727, 16
          %s729 = scalar_lea.vmem [#allocation7], %s728
          %730 = dma.done %s726, 256
        $region56: #{tpu_custom_call.1} parent=51 // pred_fallthru
          _
      $region52: #{tpu_custom_call.1} parent=5 // pred_fallthru
        _
    $region6: #{tpu_custom_call.1} parent=1 // loop_footer
      %s19 = sadd.s32 1, %s15
    $region7: #{tpu_custom_call.1} parent=1 // loop_footer_branch
      %14 = sbr.rel target = $region3
    $region8: #{tpu_custom_call.1} parent=1 // loop_exit
      _
    %731 = vsyncpa [#allocation5], 1
    %s732 = scalar_lea.sflag [#allocation5], 1
    %733 = vsyncpa %s732, 1
    %734 = vsyncpa [#allocation6], 1
    %s735 = scalar_lea.sflag [#allocation6], 1
    %736 = vsyncpa %s735, 1

</llo_original>
